<compile_context>
chip_gen: v5e
topology: v5e:2x2
jax: 0.10.0
libtpu: 0.0.40
codegen_flags: <defaults>
</compile_context>

<pallas_src>
import jax
import jax.numpy as jnp
from jax.experimental import pallas as pl
from jax.experimental.pallas import tpu as pltpu

# ---------------------------------------------------------------------------
# Small, self-consistent shapes (scaled down from the original module:
# vit num_features 768 -> 64, out_features 1024*4 -> 128, dim_feedforward
# 2048 -> 256, num_heads 16 -> 4, point_cloud_size -> 16).
# ---------------------------------------------------------------------------
B = 2            # batch_size
V = 2            # num_views
C = 3            # image channels
H = W = 32       # image spatial size
PATCH = 16       # ViT patch size
NP = (H // PATCH) * (W // PATCH)   # patches per image (= 4)
PD = C * PATCH * PATCH             # flattened patch dim (= 768)
VIT_F = 64       # stand-in for self.vit.num_features
VIT_PAD = 128    # VIT_F zero-padded to a full lane width
E = 128          # aggregator out_features (== attention embed_dim)
HEADS = 4        # num_heads (must divide E) -- attention is exact identity at L=1
FF = 256         # dim_feedforward
PCS = 16         # point_cloud_size
OUT_RAW = PCS * 3                  # 48 real output columns
OUT_PAD = 128                      # lane-dense padded output width

# Static offsets into the single concatenated bias vector.
B_PE = 0
B_FUSE = VIT_PAD
B_W2 = VIT_PAD + FF
B_W3 = VIT_PAD + 2 * FF
BIAS_TOT = VIT_PAD + 2 * FF + OUT_PAD   # 768

_VMEM = pl.BlockSpec(memory_space=pltpu.MemorySpace.VMEM)


# ---------------------------------------------------------------------------
# Single fused kernel: 4 bf16 MXU dots, everything stays in VMEM/vregs.
# ---------------------------------------------------------------------------
def fused_forward_kernel(pm_ref, pe_w_ref, wf_ref, w2_ref, w3_ref, bias_ref,
                         out_ref):
    # --- stand-in ViT patch embedding on the pre-averaged patches.
    # Pre-averaging (wrapper) + view-mean fusion is exact by linearity:
    # mean over V*NP tokens then embed == embed then mean-of-means.
    mean_f = (jnp.dot(pm_ref[...], pe_w_ref[...],
                      preferred_element_type=jnp.float32)
              + bias_ref[:, B_PE:B_PE + VIT_PAD])          # (B, 128) f32

    # --- folded chain: aggregator -> MHA v_proj -> MHA out_proj -> linear1.
    # seq_len == 1 => softmax over one key is 1.0, so the attention output is
    # exactly out_proj(v_proj(x)); with no nonlinearity anywhere in the chain
    # the four Linear layers were pre-multiplied into one weight in f32.
    h = (jnp.dot(mean_f.astype(jnp.bfloat16), wf_ref[...],
                 preferred_element_type=jnp.float32)
         + bias_ref[:, B_FUSE:B_FUSE + FF])                # (B, FF) f32
    h = jnp.maximum(h, 0.2 * h)                            # LeakyReLU(0.2)

    # --- linear2 -> LeakyReLU(0.2) ---
    h = (jnp.dot(h.astype(jnp.bfloat16), w2_ref[...],
                 preferred_element_type=jnp.float32)
         + bias_ref[:, B_W2:B_W2 + FF])                    # (B, FF) f32
    h = jnp.maximum(h, 0.2 * h)

    # --- linear3 (point_cloud_size*3, zero-padded to 128 lanes) ---
    out_ref[...] = (jnp.dot(h.astype(jnp.bfloat16), w3_ref[...],
                            preferred_element_type=jnp.float32)
                    + bias_ref[:, B_W3:B_W3 + OUT_PAD])    # (B, 128) f32


# ---------------------------------------------------------------------------
# Wrapper
# ---------------------------------------------------------------------------
def pointcloud_net_forward(x, params):
    b, v, c, h, w = x.shape
    xb = x.reshape(b * v, c, h, w)

    # 16x16 non-overlapping patch extraction (conv-as-matmul, stride == kernel).
    # TODO(synk): at real ViT scale (224^2, 196 patches/view), express this
    # unfold via a gridded BlockSpec index_map loading (PATCH, W) row strips
    # instead of an HBM-materializing transpose; negligible at toy size.
    p = xb.reshape(b * v, c, h // PATCH, PATCH, w // PATCH, PATCH)
    p = p.transpose(0, 2, 4, 1, 3, 5).reshape(b, v * NP, PD)

    # Pre-average over all V*NP tokens per batch item (mean-of-means over
    # patches and views) BEFORE the linear patch embedding — exact by
    # linearity, shrinks the 768-deep matmul from M=16 to M=2.
    p_mean = jnp.mean(p, axis=1).astype(jnp.bfloat16)      # (B, PD)

    # TODO(synk): at production sizes (num_features=768, out_features=4096,
    # dim_feedforward=2048) the all-resident weight set exceeds v7x's 64 MiB
    # VMEM; add a grid over the E/FF output dim with ~512-wide weight tiles,
    # an f32 accumulator scratch, pl.when init/finalize, and mark the
    # independent axes "parallel" so v7x's 2 TensorCores are both used.
    pc_pad = pl.pallas_call(
        fused_forward_kernel,
        out_shape=jax.ShapeDtypeStruct((b, OUT_PAD), jnp.float32),
        in_specs=[_VMEM] * 6,
        out_specs=_VMEM,
    )(p_mean, params["pe_w"], params["w_fused"], params["w2"], params["w3"],
      params["biases"])

    # Drop the lane padding, then point_cloud.view(batch_size, -1, 3).
    return pc_pad[:, :OUT_RAW].reshape(b, PCS, 3)


def init_params(key):
    ks = jax.random.split(key, 14)

    def nrm(k, shape, scale=0.02):
        return scale * jax.random.normal(k, shape, dtype=jnp.float32)

    # Raw (reference-layout) parameters, all f32.
    pe_w = nrm(ks[0], (PD, VIT_F));    pe_b = nrm(ks[1], (1, VIT_F))
    agg_w = nrm(ks[2], (VIT_F, E));    agg_b = nrm(ks[3], (1, E))
    wv = nrm(ks[4], (E, E));           bv = nrm(ks[5], (1, E))
    wo = nrm(ks[6], (E, E));           bo = nrm(ks[7], (1, E))
    w1 = nrm(ks[8], (E, FF));          b1 = nrm(ks[9], (1, FF))
    w2 = nrm(ks[10], (FF, FF));        b2 = nrm(ks[11], (1, FF))
    w3 = nrm(ks[12], (FF, OUT_RAW));   b3 = nrm(ks[13], (1, OUT_RAW))

    # Fold aggregator -> v_proj -> out_proj -> linear1 (no nonlinearity in
    # between; seq_len==1 attention is exactly out_proj(v_proj(x))).  Fold in
    # f32, cast to bf16 once.
    w_chain = agg_w @ wv @ wo @ w1                                  # (VIT_F, FF)
    b_chain = ((agg_b @ wv + bv) @ wo + bo) @ w1 + b1               # (1, FF)

    # Zero-pad the VIT feature dim 64 -> 128 (lane-dense intermediates).
    pe_w_pad = jnp.zeros((PD, VIT_PAD), jnp.float32).at[:, :VIT_F].set(pe_w)
    pe_b_pad = jnp.zeros((1, VIT_PAD), jnp.float32).at[:, :VIT_F].set(pe_b)
    w_fused = jnp.zeros((VIT_PAD, FF), jnp.float32).at[:VIT_F, :].set(w_chain)

    # Zero-pad the final Linear 48 -> 128 output lanes (unmasked full-lane vst).
    w3_pad = jnp.zeros((FF, OUT_PAD), jnp.float32).at[:, :OUT_RAW].set(w3)
    b3_pad = jnp.zeros((1, OUT_PAD), jnp.float32).at[:, :OUT_RAW].set(b3)

    # Single concatenated f32 bias vector (one operand instead of seven).
    biases = jnp.concatenate([pe_b_pad, b_chain, b2, b3_pad], axis=1)
    assert biases.shape == (1, BIAS_TOT)

    return dict(
        pe_w=pe_w_pad.astype(jnp.bfloat16),
        w_fused=w_fused.astype(jnp.bfloat16),
        w2=w2.astype(jnp.bfloat16),
        w3=w3_pad.astype(jnp.bfloat16),
        biases=biases,
    )


if __name__ == "__main__":
    key = jax.random.PRNGKey(0)
    kx, kp = jax.random.split(key)
    x = jax.random.normal(kx, (B, V, C, H, W), dtype=jnp.float32)
    params = init_params(kp)

    pc = pointcloud_net_forward(x, params)
    pc = jax.block_until_ready(pc)

    assert pc.shape == (B, PCS, 3), pc.shape
    assert bool(jnp.all(jnp.isfinite(pc)))
    print("KERNEL_OK")
</pallas_src>

<mosaic_0001>
module attributes {stable_mosaic.version = 11 : i64} {
  func.func @fused_forward_kernel(%arg0: memref<2x768xbf16, #tpu.memory_space<vmem>>, %arg1: memref<768x128xbf16, #tpu.memory_space<vmem>>, %arg2: memref<128x256xbf16, #tpu.memory_space<vmem>>, %arg3: memref<256x256xbf16, #tpu.memory_space<vmem>>, %arg4: memref<256x128xbf16, #tpu.memory_space<vmem>>, %arg5: memref<1x768xf32, #tpu.memory_space<vmem>>, %arg6: memref<2x128xf32, #tpu.memory_space<vmem>>) attributes {dimension_semantics = [], scalar_prefetch = 0 : i64, scratch_operands = 0 : i64, tpu.core_type = #tpu.core_type<tc>} {
    %c0 = arith.constant 0 : index
    %c0_0 = arith.constant 0 : index
    %0 = vector.load %arg0[%c0, %c0_0] : memref<2x768xbf16, #tpu.memory_space<vmem>>, vector<2x768xbf16>
    %c0_1 = arith.constant 0 : index
    %c0_2 = arith.constant 0 : index
    %1 = vector.load %arg1[%c0_1, %c0_2] : memref<768x128xbf16, #tpu.memory_space<vmem>>, vector<768x128xbf16>
    %cst = arith.constant dense<0.000000e+00> : vector<2x128xf32>
    %2 = tpu.matmul %0, %1, %cst {dimension_numbers = #tpu.dot_dimension_numbers<[1], [0], [0], [1], [0, 0, 1, 1], [], []>} : vector<2x768xbf16>, vector<768x128xbf16>, vector<2x128xf32> -> vector<2x128xf32>
    %c0_3 = arith.constant 0 : index
    %c0_4 = arith.constant 0 : index
    %3 = vector.load %arg5[%c0_3, %c0_4] : memref<1x768xf32, #tpu.memory_space<vmem>>, vector<1x128xf32>
    %4 = vector.broadcast %3 : vector<1x128xf32> to vector<2x128xf32>
    %5 = arith.addf %2, %4 : vector<2x128xf32>
    %6 = arith.truncf %5 : vector<2x128xf32> to vector<2x128xbf16>
    %c0_5 = arith.constant 0 : index
    %c0_6 = arith.constant 0 : index
    %7 = vector.load %arg2[%c0_5, %c0_6] : memref<128x256xbf16, #tpu.memory_space<vmem>>, vector<128x256xbf16>
    %cst_7 = arith.constant dense<0.000000e+00> : vector<2x256xf32>
    %8 = tpu.matmul %6, %7, %cst_7 {dimension_numbers = #tpu.dot_dimension_numbers<[1], [0], [0], [1], [0, 0, 1, 1], [], []>} : vector<2x128xbf16>, vector<128x256xbf16>, vector<2x256xf32> -> vector<2x256xf32>
    %c0_8 = arith.constant 0 : index
    %c128 = arith.constant 128 : index
    %9 = vector.load %arg5[%c0_8, %c128] : memref<1x768xf32, #tpu.memory_space<vmem>>, vector<1x256xf32>
    %10 = vector.broadcast %9 : vector<1x256xf32> to vector<2x256xf32>
    %11 = arith.addf %8, %10 : vector<2x256xf32>
    %cst_9 = arith.constant 2.000000e-01 : f32
    %12 = vector.broadcast %cst_9 : f32 to vector<2x256xf32>
    %13 = arith.mulf %12, %11 : vector<2x256xf32>
    %14 = arith.maximumf %11, %13 : vector<2x256xf32>
    %15 = arith.truncf %14 : vector<2x256xf32> to vector<2x256xbf16>
    %c0_10 = arith.constant 0 : index
    %c0_11 = arith.constant 0 : index
    %16 = vector.load %arg3[%c0_10, %c0_11] : memref<256x256xbf16, #tpu.memory_space<vmem>>, vector<256x256xbf16>
    %cst_12 = arith.constant dense<0.000000e+00> : vector<2x256xf32>
    %17 = tpu.matmul %15, %16, %cst_12 {dimension_numbers = #tpu.dot_dimension_numbers<[1], [0], [0], [1], [0, 0, 1, 1], [], []>} : vector<2x256xbf16>, vector<256x256xbf16>, vector<2x256xf32> -> vector<2x256xf32>
    %c0_13 = arith.constant 0 : index
    %c384 = arith.constant 384 : index
    %18 = vector.load %arg5[%c0_13, %c384] : memref<1x768xf32, #tpu.memory_space<vmem>>, vector<1x256xf32>
    %19 = vector.broadcast %18 : vector<1x256xf32> to vector<2x256xf32>
    %20 = arith.addf %17, %19 : vector<2x256xf32>
    %cst_14 = arith.constant 2.000000e-01 : f32
    %21 = vector.broadcast %cst_14 : f32 to vector<2x256xf32>
    %22 = arith.mulf %21, %20 : vector<2x256xf32>
    %23 = arith.maximumf %20, %22 : vector<2x256xf32>
    %24 = arith.truncf %23 : vector<2x256xf32> to vector<2x256xbf16>
    %c0_15 = arith.constant 0 : index
    %c0_16 = arith.constant 0 : index
    %25 = vector.load %arg4[%c0_15, %c0_16] : memref<256x128xbf16, #tpu.memory_space<vmem>>, vector<256x128xbf16>
    %cst_17 = arith.constant dense<0.000000e+00> : vector<2x128xf32>
    %26 = tpu.matmul %24, %25, %cst_17 {dimension_numbers = #tpu.dot_dimension_numbers<[1], [0], [0], [1], [0, 0, 1, 1], [], []>} : vector<2x256xbf16>, vector<256x128xbf16>, vector<2x128xf32> -> vector<2x128xf32>
    %c0_18 = arith.constant 0 : index
    %c640 = arith.constant 640 : index
    %27 = vector.load %arg5[%c0_18, %c640] : memref<1x768xf32, #tpu.memory_space<vmem>>, vector<1x128xf32>
    %28 = vector.broadcast %27 : vector<1x128xf32> to vector<2x128xf32>
    %29 = arith.addf %26, %28 : vector<2x128xf32>
    %c0_19 = arith.constant 0 : index
    %c0_20 = arith.constant 0 : index
    %30 = vector.load %arg6[%c0_19, %c0_20] : memref<2x128xf32, #tpu.memory_space<vmem>>, vector<2x128xf32>
    tpu.vector_store %arg6[%c0_19, %c0_20], %29 {strides = array<i32>} : memref<2x128xf32, #tpu.memory_space<vmem>>, vector<2x128xf32>,
    return
  }
}

</mosaic_0001>

<llo_original>
// kernel: tpu_custom_call.1
$region0: #{tpu_custom_call.1}
  #allocation0 [shape = 'u32[]', space=smem, size = 0x4, offset = 0x4, fixed_abs, tag = 'smem constant byte address 0x4 - core index']
  #allocation1 [shape = 'u32[72,128]{1,0:T(1,128)}', space=vmem, size = 0x9000, scoped, tag = 'internal scratch']
  %s0 = inlined_call_operand.hbm [shape: bf16[2,768], index: 0, kind: input, shape index: {}]
  %s1 = inlined_call_operand.hbm [shape: bf16[768,128], index: 1, kind: input, shape index: {}]
  %s2 = inlined_call_operand.hbm [shape: bf16[128,256], index: 2, kind: input, shape index: {}]
  %s3 = inlined_call_operand.hbm [shape: bf16[256,256], index: 3, kind: input, shape index: {}]
  %s4 = inlined_call_operand.hbm [shape: bf16[256,128], index: 4, kind: input, shape index: {}]
  %s5 = inlined_call_operand.hbm [shape: f32[1,768], index: 5, kind: input, shape index: {}]
  %s6 = inlined_call_operand.hbm [shape: f32[2,128], index: 6, kind: output, shape index: {}]
  %s7 = sld [smem:[#allocation0]]
  $region58: #{tpu_custom_call.1} parent=0
    _
  %s9 = ssub.s32 1, %s7
  %s10 = scalar_select 0, %s9, %s7
  $region1: #{tpu_custom_call.1} parent=0
    #allocation2 [shape = 'u8[3072]{0}', space=vmem, size = 0xc00, scoped, tag = 'input window, operand 0, single buffered']
    #allocation3 [shape = 's32[1]{0}', space=sflag, size = 0x4, scoped, tag = 'scoped memory for tpu_custom_call.1']
    #allocation4 [shape = 's32[1]{0}', space=sflag, size = 0x4, scoped, tag = 'scoped memory for tpu_custom_call.1']
    #allocation5 [shape = 'u8[196608]{0}', space=vmem, size = 0x30000, scoped, tag = 'input window, operand 1, single buffered']
    #allocation6 [shape = 's32[1]{0}', space=sflag, size = 0x4, scoped, tag = 'scoped memory for tpu_custom_call.1']
    #allocation7 [shape = 'u8[65536]{0}', space=vmem, size = 0x10000, scoped, tag = 'input window, operand 2, single buffered']
    #allocation8 [shape = 'u8[131072]{0}', space=vmem, size = 0x20000, scoped, tag = 'input window, operand 3, single buffered']
    #allocation9 [shape = 's32[1]{0}', space=sflag, size = 0x4, scoped, tag = 'scoped memory for tpu_custom_call.1']
    #allocation10 [shape = 'u8[65536]{0}', space=vmem, size = 0x10000, scoped, tag = 'input window, operand 4, single buffered']
    #allocation11 [shape = 'u8[3072]{0}', space=vmem, size = 0xc00, scoped, tag = 'input window, operand 5, single buffered']
    #allocation12 [shape = 's32[1]{0}', space=sflag, size = 0x4, scoped, tag = 'scoped memory for tpu_custom_call.1']
    #allocation13 [shape = 'u8[1024]{0}', space=vmem, size = 0x400, scoped, tag = 'output window, operand 0, single buffered']
    %11 = vsyncpa [#allocation3], 0
    %12 = vsyncpa [#allocation6], 0
    %13 = vsyncpa [#allocation9], 0
    %14 = vsyncpa [#allocation12], 0
    %15 = vsyncpa [#allocation4], 0
    // Predicated region
    $region2: #{tpu_custom_call.1} parent=1 // pred_check
      _
    $region3: #{tpu_custom_call.1} parent=1 // pred_check_branch
      %17 = sbr.rel (0) target = $region5
    $region4: #{tpu_custom_call.1} parent=1 // pred_region
      %19 = vsyncadd [#allocation3], 0
      %s21 = sshll.u32 %s0, 4
      %s22 = int_to_ptr.hbm [resolvable:$true] %s21
      %s23 = sshll.u32 [#allocation2], 4
      %s24 = int_to_ptr.vmem [resolvable:$true] %s23
      %26 = dma.hbm_to_vmem [thread:$0]  %s22, 96, %s24, [#allocation3]
    $region5: #{tpu_custom_call.1} parent=1 // pred_fallthru
      _
    // Predicated region
    $region6: #{tpu_custom_call.1} parent=1 // pred_check
      _
    $region7: #{tpu_custom_call.1} parent=1 // pred_check_branch
      %28 = sbr.rel (0) target = $region9
    $region8: #{tpu_custom_call.1} parent=1 // pred_region
      %30 = vsyncadd [#allocation6], 0
      %s31 = sshll.u32 %s1, 4
      %s32 = int_to_ptr.hbm [resolvable:$true] %s31
      %s33 = sshll.u32 [#allocation5], 4
      %s34 = int_to_ptr.vmem [resolvable:$true] %s33
      %39 = dma.hbm_to_vmem [thread:$0]  %s32, 6144, %s34, [#allocation6], 64, 64, 4
    $region9: #{tpu_custom_call.1} parent=1 // pred_fallthru
      _
    // Predicated region
    $region10: #{tpu_custom_call.1} parent=1 // pred_check
      _
    $region11: #{tpu_custom_call.1} parent=1 // pred_check_branch
      %41 = sbr.rel (0) target = $region13
    $region12: #{tpu_custom_call.1} parent=1 // pred_region
      %43 = vsyncadd [#allocation6], 0
      %s44 = sshll.u32 %s2, 4
      %s45 = int_to_ptr.hbm [resolvable:$true] %s44
      %s46 = sshll.u32 [#allocation7], 4
      %s47 = int_to_ptr.vmem [resolvable:$true] %s46
      %52 = dma.hbm_to_vmem [thread:$0]  %s45, 2048, %s47, [#allocation6], 128, 128, 8
    $region13: #{tpu_custom_call.1} parent=1 // pred_fallthru
      _
    // Predicated region
    $region14: #{tpu_custom_call.1} parent=1 // pred_check
      _
    $region15: #{tpu_custom_call.1} parent=1 // pred_check_branch
      %54 = sbr.rel (0) target = $region17
    $region16: #{tpu_custom_call.1} parent=1 // pred_region
      %56 = vsyncadd [#allocation9], 0
      %s57 = sshll.u32 %s3, 4
      %s58 = int_to_ptr.hbm [resolvable:$true] %s57
      %s59 = sshll.u32 [#allocation8], 4
      %s60 = int_to_ptr.vmem [resolvable:$true] %s59
      %65 = dma.hbm_to_vmem [thread:$0]  %s58, 4096, %s60, [#allocation9], 128, 128, 8
    $region17: #{tpu_custom_call.1} parent=1 // pred_fallthru
      _
    // Predicated region
    $region18: #{tpu_custom_call.1} parent=1 // pred_check
      _
    $region19: #{tpu_custom_call.1} parent=1 // pred_check_branch
      %67 = sbr.rel (0) target = $region21
    $region20: #{tpu_custom_call.1} parent=1 // pred_region
      %69 = vsyncadd [#allocation9], 0
      %s70 = sshll.u32 %s4, 4
      %s71 = int_to_ptr.hbm [resolvable:$true] %s70
      %s72 = sshll.u32 [#allocation10], 4
      %s73 = int_to_ptr.vmem [resolvable:$true] %s72
      %78 = dma.hbm_to_vmem [thread:$0]  %s71, 2048, %s73, [#allocation9], 64, 64, 4
    $region21: #{tpu_custom_call.1} parent=1 // pred_fallthru
      _
    // Predicated region
    $region22: #{tpu_custom_call.1} parent=1 // pred_check
      _
    $region23: #{tpu_custom_call.1} parent=1 // pred_check_branch
      %80 = sbr.rel (0) target = $region25
    $region24: #{tpu_custom_call.1} parent=1 // pred_region
      %82 = vsyncadd [#allocation12], 0
      %s84 = sshll.u32 %s5, 4
      %s85 = int_to_ptr.hbm [resolvable:$true] %s84
      %s86 = sshll.u32 [#allocation11], 4
      %s87 = int_to_ptr.vmem [resolvable:$true] %s86
      %89 = dma.hbm_to_vmem [thread:$0]  %s85, 96, %s87, [#allocation12]
    $region25: #{tpu_custom_call.1} parent=1 // pred_fallthru
      _
    // Predicated region
    $region26: #{tpu_custom_call.1} parent=1 // pred_check
      _
    $region27: #{tpu_custom_call.1} parent=1 // pred_check_branch
      %91 = sbr.rel (0) target = $region29
    $region28: #{tpu_custom_call.1} parent=1 // pred_region
      %93 = dma.done [#allocation3], 96
    $region29: #{tpu_custom_call.1} parent=1 // pred_fallthru
      _
    // Predicated region
    $region30: #{tpu_custom_call.1} parent=1 // pred_check
      _
    $region31: #{tpu_custom_call.1} parent=1 // pred_check_branch
      %95 = sbr.rel (0) target = $region33
    $region32: #{tpu_custom_call.1} parent=1 // pred_region
      %97 = dma.done [#allocation6], 6144
    $region33: #{tpu_custom_call.1} parent=1 // pred_fallthru
      _
    // Predicated region
    $region34: #{tpu_custom_call.1} parent=1 // pred_check
      _
    $region35: #{tpu_custom_call.1} parent=1 // pred_check_branch
      %99 = sbr.rel (0) target = $region37
    $region36: #{tpu_custom_call.1} parent=1 // pred_region
      %101 = dma.done [#allocation6], 2048
    $region37: #{tpu_custom_call.1} parent=1 // pred_fallthru
      _
    // Predicated region
    $region38: #{tpu_custom_call.1} parent=1 // pred_check
      _
    $region39: #{tpu_custom_call.1} parent=1 // pred_check_branch
      %103 = sbr.rel (0) target = $region41
    $region40: #{tpu_custom_call.1} parent=1 // pred_region
      %105 = dma.done [#allocation9], 4096
    $region41: #{tpu_custom_call.1} parent=1 // pred_fallthru
      _
    // Predicated region
    $region42: #{tpu_custom_call.1} parent=1 // pred_check
      _
    $region43: #{tpu_custom_call.1} parent=1 // pred_check_branch
      %107 = sbr.rel (0) target = $region45
    $region44: #{tpu_custom_call.1} parent=1 // pred_region
      %109 = dma.done [#allocation9], 2048
    $region45: #{tpu_custom_call.1} parent=1 // pred_fallthru
      _
    // Predicated region
    $region46: #{tpu_custom_call.1} parent=1 // pred_check
      _
    $region47: #{tpu_custom_call.1} parent=1 // pred_check_branch
      %111 = sbr.rel (0) target = $region49
    $region48: #{tpu_custom_call.1} parent=1 // pred_region
      %113 = dma.done [#allocation12], 96
    $region49: #{tpu_custom_call.1} parent=1 // pred_fallthru
      _
    %v114 = vld [vmem:[#allocation2] sm:$0x3f]
    %v115 = vld [vmem:[#allocation5] sm:$0xf]
    %v116 = vld [vmem:[#allocation5 + $0x4] sm:$0xf]
    %v117 = vld [vmem:[#allocation5 + $0x8] sm:$0xf]
    %v118 = vld [vmem:[#allocation5 + $0xc] sm:$0xf]
    %v119 = vld [vmem:[#allocation5 + $0x10] sm:$0xf]
    %v120 = vld [vmem:[#allocation5 + $0x14] sm:$0xf]
    %v121 = vld [vmem:[#allocation5 + $0x18] sm:$0xf]
    %v122 = vld [vmem:[#allocation5 + $0x1c] sm:$0xf]
    %v123 = vld [vmem:[#allocation5 + $0x20] sm:$0xf]
    %v124 = vld [vmem:[#allocation5 + $0x24] sm:$0xf]
    %v125 = vld [vmem:[#allocation5 + $0x28] sm:$0xf]
    %v126 = vld [vmem:[#allocation5 + $0x2c] sm:$0xf]
    %v127 = vld [vmem:[#allocation5 + $0x30] sm:$0xf]
    %v128 = vld [vmem:[#allocation5 + $0x34] sm:$0xf]
    %v129 = vld [vmem:[#allocation5 + $0x38] sm:$0xf]
    %v130 = vld [vmem:[#allocation5 + $0x3c] sm:$0xf]
    %v131 = vld [vmem:[#allocation5 + $0x40] sm:$0xf]
    %v132 = vld [vmem:[#allocation5 + $0x44] sm:$0xf]
    %v133 = vld [vmem:[#allocation5 + $0x48] sm:$0xf]
    %v134 = vld [vmem:[#allocation5 + $0x4c] sm:$0xf]
    %v135 = vld [vmem:[#allocation5 + $0x50] sm:$0xf]
    %v136 = vld [vmem:[#allocation5 + $0x54] sm:$0xf]
    %v137 = vld [vmem:[#allocation5 + $0x58] sm:$0xf]
    %v138 = vld [vmem:[#allocation5 + $0x5c] sm:$0xf]
    %v139 = vld [vmem:[#allocation5 + $0x60] sm:$0xf]
    %v140 = vld [vmem:[#allocation5 + $0x64] sm:$0xf]
    %v141 = vld [vmem:[#allocation5 + $0x68] sm:$0xf]
    %v142 = vld [vmem:[#allocation5 + $0x6c] sm:$0xf]
    %v143 = vld [vmem:[#allocation5 + $0x70] sm:$0xf]
    %v144 = vld [vmem:[#allocation5 + $0x74] sm:$0xf]
    %v145 = vld [vmem:[#allocation5 + $0x78] sm:$0xf]
    %v146 = vld [vmem:[#allocation5 + $0x7c] sm:$0xf]
    %v147 = vld [vmem:[#allocation5 + $0x80] sm:$0xf]
    %v148 = vld [vmem:[#allocation5 + $0x84] sm:$0xf]
    %v149 = vld [vmem:[#allocation5 + $0x88] sm:$0xf]
    %v150 = vld [vmem:[#allocation5 + $0x8c] sm:$0xf]
    %v151 = vld [vmem:[#allocation5 + $0x90] sm:$0xf]
    %v152 = vld [vmem:[#allocation5 + $0x94] sm:$0xf]
    %v153 = vld [vmem:[#allocation5 + $0x98] sm:$0xf]
    %v154 = vld [vmem:[#allocation5 + $0x9c] sm:$0xf]
    %v155 = vld [vmem:[#allocation5 + $0xa0] sm:$0xf]
    %v156 = vld [vmem:[#allocation5 + $0xa4] sm:$0xf]
    %v157 = vld [vmem:[#allocation5 + $0xa8] sm:$0xf]
    %v158 = vld [vmem:[#allocation5 + $0xac] sm:$0xf]
    %v159 = vld [vmem:[#allocation5 + $0xb0] sm:$0xf]
    %v160 = vld [vmem:[#allocation5 + $0xb4] sm:$0xf]
    %v161 = vld [vmem:[#allocation5 + $0xb8] sm:$0xf]
    %v162 = vld [vmem:[#allocation5 + $0xbc] sm:$0xf]
    %v163 = vld [vmem:[#allocation5 + $0xc0] sm:$0xf]
    %v164 = vld [vmem:[#allocation5 + $0xc4] sm:$0xf]
    %v165 = vld [vmem:[#allocation5 + $0xc8] sm:$0xf]
    %v166 = vld [vmem:[#allocation5 + $0xcc] sm:$0xf]
    %v167 = vld [vmem:[#allocation5 + $0xd0] sm:$0xf]
    %v168 = vld [vmem:[#allocation5 + $0xd4] sm:$0xf]
    %v169 = vld [vmem:[#allocation5 + $0xd8] sm:$0xf]
    %v170 = vld [vmem:[#allocation5 + $0xdc] sm:$0xf]
    %v171 = vld [vmem:[#allocation5 + $0xe0] sm:$0xf]
    %v172 = vld [vmem:[#allocation5 + $0xe4] sm:$0xf]
    %v173 = vld [vmem:[#allocation5 + $0xe8] sm:$0xf]
    %v174 = vld [vmem:[#allocation5 + $0xec] sm:$0xf]
    %v175 = vld [vmem:[#allocation5 + $0xf0] sm:$0xf]
    %v176 = vld [vmem:[#allocation5 + $0xf4] sm:$0xf]
    %v177 = vld [vmem:[#allocation5 + $0xf8] sm:$0xf]
    %v178 = vld [vmem:[#allocation5 + $0xfc] sm:$0xf]
    %v179 = vld [vmem:[#allocation5 + $0x100] sm:$0xf]
    %v180 = vld [vmem:[#allocation5 + $0x104] sm:$0xf]
    %v181 = vld [vmem:[#allocation5 + $0x108] sm:$0xf]
    %v182 = vld [vmem:[#allocation5 + $0x10c] sm:$0xf]
    %v183 = vld [vmem:[#allocation5 + $0x110] sm:$0xf]
    %v184 = vld [vmem:[#allocation5 + $0x114] sm:$0xf]
    %v185 = vld [vmem:[#allocation5 + $0x118] sm:$0xf]
    %v186 = vld [vmem:[#allocation5 + $0x11c] sm:$0xf]
    %v187 = vld [vmem:[#allocation5 + $0x120] sm:$0xf]
    %v188 = vld [vmem:[#allocation5 + $0x124] sm:$0xf]
    %v189 = vld [vmem:[#allocation5 + $0x128] sm:$0xf]
    %v190 = vld [vmem:[#allocation5 + $0x12c] sm:$0xf]
    %v191 = vld [vmem:[#allocation5 + $0x130] sm:$0xf]
    %v192 = vld [vmem:[#allocation5 + $0x134] sm:$0xf]
    %v193 = vld [vmem:[#allocation5 + $0x138] sm:$0xf]
    %v194 = vld [vmem:[#allocation5 + $0x13c] sm:$0xf]
    %v195 = vld [vmem:[#allocation5 + $0x140] sm:$0xf]
    %v196 = vld [vmem:[#allocation5 + $0x144] sm:$0xf]
    %v197 = vld [vmem:[#allocation5 + $0x148] sm:$0xf]
    %v198 = vld [vmem:[#allocation5 + $0x14c] sm:$0xf]
    %v199 = vld [vmem:[#allocation5 + $0x150] sm:$0xf]
    %v200 = vld [vmem:[#allocation5 + $0x154] sm:$0xf]
    %v201 = vld [vmem:[#allocation5 + $0x158] sm:$0xf]
    %v202 = vld [vmem:[#allocation5 + $0x15c] sm:$0xf]
    %v203 = vld [vmem:[#allocation5 + $0x160] sm:$0xf]
    %v204 = vld [vmem:[#allocation5 + $0x164] sm:$0xf]
    %v205 = vld [vmem:[#allocation5 + $0x168] sm:$0xf]
    %v206 = vld [vmem:[#allocation5 + $0x16c] sm:$0xf]
    %v207 = vld [vmem:[#allocation5 + $0x170] sm:$0xf]
    %v208 = vld [vmem:[#allocation5 + $0x174] sm:$0xf]
    %v209 = vld [vmem:[#allocation5 + $0x178] sm:$0xf]
    %v210 = vld [vmem:[#allocation5 + $0x17c] sm:$0xf]
    %v211 = vld [vmem:[#allocation11] sm:$0x1]
    %v213 = vperm.slane %v211, 0
    %216 = vst [vmem:[#allocation1] ss:$9 sm:$0xff] %v114
    %v217 = vld [vmem:[#allocation1] sm:$0xff]
    %v218 = vld [vmem:[#allocation1 + $0x9] sm:$0xff]
    %v219 = vld [vmem:[#allocation1 + $0x12] sm:$0xff]
    %v220 = vld [vmem:[#allocation1 + $0x1b] sm:$0xff]
    %v221 = vld [vmem:[#allocation1 + $0x24] sm:$0xff]
    %v222 = vld [vmem:[#allocation1 + $0x2d] sm:$0xff]
    %v325 = vunpack.c.l.b16 %v115
    %v326 = vunpack.c.l.b16 %v116
    %v327 = vunpack.c.l.b16 %v117
    %v328 = vunpack.c.l.b16 %v118
    %v329 = vunpack.c.l.b16 %v119
    %v330 = vunpack.c.l.b16 %v120
    %v331 = vunpack.c.l.b16 %v121
    %v332 = vunpack.c.l.b16 %v122
    %v333 = vunpack.c.l.b16 %v123
    %v334 = vunpack.c.l.b16 %v124
    %v335 = vunpack.c.l.b16 %v125
    %v336 = vunpack.c.l.b16 %v126
    %v337 = vunpack.c.l.b16 %v127
    %v338 = vunpack.c.l.b16 %v128
    %v339 = vunpack.c.l.b16 %v129
    %v340 = vunpack.c.l.b16 %v130
    %v341 = vunpack.c.l.b16 %v131
    %v342 = vunpack.c.l.b16 %v132
    %v343 = vunpack.c.l.b16 %v133
    %v344 = vunpack.c.l.b16 %v134
    %v345 = vunpack.c.l.b16 %v135
    %v346 = vunpack.c.l.b16 %v136
    %v347 = vunpack.c.l.b16 %v137
    %v348 = vunpack.c.l.b16 %v138
    %v349 = vunpack.c.l.b16 %v139
    %v350 = vunpack.c.l.b16 %v140
    %v351 = vunpack.c.l.b16 %v141
    %v352 = vunpack.c.l.b16 %v142
    %v353 = vunpack.c.l.b16 %v143
    %v354 = vunpack.c.l.b16 %v144
    %v355 = vunpack.c.l.b16 %v145
    %v356 = vunpack.c.l.b16 %v146
    %v357 = vunpack.c.l.b16 %v147
    %v358 = vunpack.c.l.b16 %v148
    %v359 = vunpack.c.l.b16 %v149
    %v360 = vunpack.c.l.b16 %v150
    %v361 = vunpack.c.l.b16 %v151
    %v362 = vunpack.c.l.b16 %v152
    %v363 = vunpack.c.l.b16 %v153
    %v364 = vunpack.c.l.b16 %v154
    %v365 = vunpack.c.l.b16 %v155
    %v366 = vunpack.c.l.b16 %v156
    %v367 = vunpack.c.l.b16 %v157
    %v368 = vunpack.c.l.b16 %v158
    %v369 = vunpack.c.l.b16 %v159
    %v370 = vunpack.c.l.b16 %v160
    %v371 = vunpack.c.l.b16 %v161
    %v372 = vunpack.c.l.b16 %v162
    %v373 = vunpack.c.l.b16 %v163
    %v374 = vunpack.c.l.b16 %v164
    %v375 = vunpack.c.l.b16 %v165
    %v376 = vunpack.c.l.b16 %v166
    %v377 = vunpack.c.l.b16 %v167
    %v378 = vunpack.c.l.b16 %v168
    %v379 = vunpack.c.l.b16 %v169
    %v380 = vunpack.c.l.b16 %v170
    %v381 = vunpack.c.l.b16 %v171
    %v382 = vunpack.c.l.b16 %v172
    %v383 = vunpack.c.l.b16 %v173
    %v384 = vunpack.c.l.b16 %v174
    %v385 = vunpack.c.l.b16 %v175
    %v386 = vunpack.c.l.b16 %v176
    %v387 = vunpack.c.l.b16 %v177
    %v388 = vunpack.c.l.b16 %v178
    %v389 = vunpack.c.l.b16 %v179
    %v390 = vunpack.c.l.b16 %v180
    %v391 = vunpack.c.l.b16 %v181
    %v392 = vunpack.c.l.b16 %v182
    %v393 = vunpack.c.l.b16 %v183
    %v394 = vunpack.c.l.b16 %v184
    %v395 = vunpack.c.l.b16 %v185
    %v396 = vunpack.c.l.b16 %v186
    %v397 = vunpack.c.l.b16 %v187
    %v398 = vunpack.c.l.b16 %v188
    %v399 = vunpack.c.l.b16 %v189
    %v400 = vunpack.c.l.b16 %v190
    %v401 = vunpack.c.l.b16 %v191
    %v402 = vunpack.c.l.b16 %v192
    %v403 = vunpack.c.l.b16 %v193
    %v404 = vunpack.c.l.b16 %v194
    %v405 = vunpack.c.l.b16 %v195
    %v406 = vunpack.c.l.b16 %v196
    %v407 = vunpack.c.l.b16 %v197
    %v408 = vunpack.c.l.b16 %v198
    %v409 = vunpack.c.l.b16 %v199
    %v410 = vunpack.c.l.b16 %v200
    %v411 = vunpack.c.l.b16 %v201
    %v412 = vunpack.c.l.b16 %v202
    %v413 = vunpack.c.l.b16 %v203
    %v414 = vunpack.c.l.b16 %v204
    %v415 = vunpack.c.l.b16 %v205
    %v416 = vunpack.c.l.b16 %v206
    %v417 = vunpack.c.l.b16 %v207
    %v418 = vunpack.c.l.b16 %v208
    %v419 = vunpack.c.l.b16 %v209
    %v420 = vunpack.c.l.b16 %v210
    %v421 = vpack.c.b16 %v326, %v325
    %v422 = vpack.c.b16 %v328, %v327
    %v423 = vpack.c.b16 %v330, %v329
    %v424 = vpack.c.b16 %v332, %v331
    %v425 = vpack.c.b16 %v334, %v333
    %v426 = vpack.c.b16 %v336, %v335
    %v427 = vpack.c.b16 %v338, %v337
    %v428 = vpack.c.b16 %v340, %v339
    %v429 = vpack.c.b16 %v342, %v341
    %v430 = vpack.c.b16 %v344, %v343
    %v431 = vpack.c.b16 %v346, %v345
    %v432 = vpack.c.b16 %v348, %v347
    %v433 = vpack.c.b16 %v350, %v349
    %v434 = vpack.c.b16 %v352, %v351
    %v435 = vpack.c.b16 %v354, %v353
    %v436 = vpack.c.b16 %v356, %v355
    %v437 = vpack.c.b16 %v358, %v357
    %v438 = vpack.c.b16 %v360, %v359
    %v439 = vpack.c.b16 %v362, %v361
    %v440 = vpack.c.b16 %v364, %v363
    %v441 = vpack.c.b16 %v366, %v365
    %v442 = vpack.c.b16 %v368, %v367
    %v443 = vpack.c.b16 %v370, %v369
    %v444 = vpack.c.b16 %v372, %v371
    %v445 = vpack.c.b16 %v374, %v373
    %v446 = vpack.c.b16 %v376, %v375
    %v447 = vpack.c.b16 %v378, %v377
    %v448 = vpack.c.b16 %v380, %v379
    %v449 = vpack.c.b16 %v382, %v381
    %v450 = vpack.c.b16 %v384, %v383
    %v451 = vpack.c.b16 %v386, %v385
    %v452 = vpack.c.b16 %v388, %v387
    %v453 = vpack.c.b16 %v390, %v389
    %v454 = vpack.c.b16 %v392, %v391
    %v455 = vpack.c.b16 %v394, %v393
    %v456 = vpack.c.b16 %v396, %v395
    %v457 = vpack.c.b16 %v398, %v397
    %v458 = vpack.c.b16 %v400, %v399
    %v459 = vpack.c.b16 %v402, %v401
    %v460 = vpack.c.b16 %v404, %v403
    %v461 = vpack.c.b16 %v406, %v405
    %v462 = vpack.c.b16 %v408, %v407
    %v463 = vpack.c.b16 %v410, %v409
    %v464 = vpack.c.b16 %v412, %v411
    %v465 = vpack.c.b16 %v414, %v413
    %v466 = vpack.c.b16 %v416, %v415
    %v467 = vpack.c.b16 %v418, %v417
    %v468 = vpack.c.b16 %v420, %v419
    %517 = vmatpush.bf16.msra.mxu0 %v428
    %518 = vmatpush.bf16.msra.mxu0 %v427
    %519 = vmatpush.bf16.msra.mxu0 %v426
    %520 = vmatpush.bf16.msra.mxu0 %v425
    %521 = vmatpush.bf16.msra.mxu0 %v424
    %522 = vmatpush.bf16.msra.mxu0 %v423
    %523 = vmatpush.bf16.msra.mxu0 %v422
    %524 = vmatpush.bf16.msra.mxu0 %v421
    %525 = vmatmul.bf16.gmra.mxu0 %v217
    %v526 = vpop.f32.mrf.mxu0
    %v527 = vadd.f32 %v213, %v526
    %v528 = vpop.f32.mrf.mxu0
    %529 = vdwg.mxu0
    %530 = vmatpush.bf16.msra.mxu0 %v436
    %531 = vmatpush.bf16.msra.mxu0 %v435
    %532 = vmatpush.bf16.msra.mxu0 %v434
    %533 = vmatpush.bf16.msra.mxu0 %v433
    %534 = vmatpush.bf16.msra.mxu0 %v432
    %535 = vmatpush.bf16.msra.mxu0 %v431
    %536 = vmatpush.bf16.msra.mxu0 %v430
    %537 = vmatpush.bf16.msra.mxu0 %v429
    %538 = vmatmul.bf16.gmra.mxu0 %v218
    %v539 = vpop.f32.mrf.mxu0
    %v540 = vadd.f32 %v527, %v539
    %v541 = vpop.f32.mrf.mxu0
    %542 = vdwg.mxu0
    %543 = vmatpush.bf16.msra.mxu0 %v444
    %544 = vmatpush.bf16.msra.mxu0 %v443
    %545 = vmatpush.bf16.msra.mxu0 %v442
    %546 = vmatpush.bf16.msra.mxu0 %v441
    %547 = vmatpush.bf16.msra.mxu0 %v440
    %548 = vmatpush.bf16.msra.mxu0 %v439
    %549 = vmatpush.bf16.msra.mxu0 %v438
    %550 = vmatpush.bf16.msra.mxu0 %v437
    %551 = vmatmul.bf16.gmra.mxu0 %v219
    %v552 = vpop.f32.mrf.mxu0
    %v553 = vadd.f32 %v540, %v552
    %v554 = vpop.f32.mrf.mxu0
    %555 = vdwg.mxu0
    %556 = vmatpush.bf16.msra.mxu0 %v452
    %557 = vmatpush.bf16.msra.mxu0 %v451
    %558 = vmatpush.bf16.msra.mxu0 %v450
    %559 = vmatpush.bf16.msra.mxu0 %v449
    %560 = vmatpush.bf16.msra.mxu0 %v448
    %561 = vmatpush.bf16.msra.mxu0 %v447
    %562 = vmatpush.bf16.msra.mxu0 %v446
    %563 = vmatpush.bf16.msra.mxu0 %v445
    %564 = vmatmul.bf16.gmra.mxu0 %v220
    %v565 = vpop.f32.mrf.mxu0
    %v566 = vadd.f32 %v553, %v565
    %v567 = vpop.f32.mrf.mxu0
    %568 = vdwg.mxu0
    %569 = vmatpush.bf16.msra.mxu0 %v460
    %570 = vmatpush.bf16.msra.mxu0 %v459
    %571 = vmatpush.bf16.msra.mxu0 %v458
    %572 = vmatpush.bf16.msra.mxu0 %v457
    %573 = vmatpush.bf16.msra.mxu0 %v456
    %574 = vmatpush.bf16.msra.mxu0 %v455
    %575 = vmatpush.bf16.msra.mxu0 %v454
    %576 = vmatpush.bf16.msra.mxu0 %v453
    %577 = vmatmul.bf16.gmra.mxu0 %v221
    %v578 = vpop.f32.mrf.mxu0
    %v579 = vadd.f32 %v566, %v578
    %v580 = vpop.f32.mrf.mxu0
    %581 = vdwg.mxu0
    %582 = vmatpush.bf16.msra.mxu0 %v468
    %583 = vmatpush.bf16.msra.mxu0 %v467
    %584 = vmatpush.bf16.msra.mxu0 %v466
    %585 = vmatpush.bf16.msra.mxu0 %v465
    %586 = vmatpush.bf16.msra.mxu0 %v464
    %587 = vmatpush.bf16.msra.mxu0 %v463
    %588 = vmatpush.bf16.msra.mxu0 %v462
    %589 = vmatpush.bf16.msra.mxu0 %v461
    %590 = vmatmul.bf16.gmra.mxu0 %v222
    %v591 = vpop.f32.mrf.mxu0
    %v592 = vadd.f32 %v579, %v591
    %v593 = vpop.f32.mrf.mxu0
    %594 = vdwg.mxu0
    %v595 = vpack.c.bf16 %v592, %v592
    %v596 = vld [vmem:[#allocation7] sm:$0xff]
    %v597 = vld [vmem:[#allocation7 + $0x8] sm:$0xff]
    %v598 = vld [vmem:[#allocation7 + $0x10] sm:$0xff]
    %v599 = vld [vmem:[#allocation7 + $0x18] sm:$0xff]
    %v600 = vld [vmem:[#allocation7 + $0x20] sm:$0xff]
    %v601 = vld [vmem:[#allocation7 + $0x28] sm:$0xff]
    %v602 = vld [vmem:[#allocation7 + $0x30] sm:$0xff]
    %v603 = vld [vmem:[#allocation7 + $0x38] sm:$0xff]
    %v604 = vld [vmem:[#allocation7 + $0x40] sm:$0xff]
    %v605 = vld [vmem:[#allocation7 + $0x48] sm:$0xff]
    %v606 = vld [vmem:[#allocation7 + $0x50] sm:$0xff]
    %v607 = vld [vmem:[#allocation7 + $0x58] sm:$0xff]
    %v608 = vld [vmem:[#allocation7 + $0x60] sm:$0xff]
    %v609 = vld [vmem:[#allocation7 + $0x68] sm:$0xff]
    %v610 = vld [vmem:[#allocation7 + $0x70] sm:$0xff]
    %v611 = vld [vmem:[#allocation7 + $0x78] sm:$0xff]
    %v612 = vld [vmem:[#allocation11 + $0x1] sm:$0x3]
    %v614 = vperm.slane %v612, 0
    %v615 = vperm.slane %v612, 1
    %v634 = vunpack.c.l.b16 %v596
    %v635 = vunpack.c.h.b16 %v596
    %v636 = vunpack.c.l.b16 %v597
    %v637 = vunpack.c.h.b16 %v597
    %v638 = vunpack.c.l.b16 %v598
    %v639 = vunpack.c.h.b16 %v598
    %v640 = vunpack.c.l.b16 %v599
    %v641 = vunpack.c.h.b16 %v599
    %v642 = vunpack.c.l.b16 %v600
    %v643 = vunpack.c.h.b16 %v600
    %v644 = vunpack.c.l.b16 %v601
    %v645 = vunpack.c.h.b16 %v601
    %v646 = vunpack.c.l.b16 %v602
    %v647 = vunpack.c.h.b16 %v602
    %v648 = vunpack.c.l.b16 %v603
    %v649 = vunpack.c.h.b16 %v603
    %v650 = vunpack.c.l.b16 %v604
    %v651 = vunpack.c.h.b16 %v604
    %v652 = vunpack.c.l.b16 %v605
    %v653 = vunpack.c.h.b16 %v605
    %v654 = vunpack.c.l.b16 %v606
    %v655 = vunpack.c.h.b16 %v606
    %v656 = vunpack.c.l.b16 %v607
    %v657 = vunpack.c.h.b16 %v607
    %v658 = vunpack.c.l.b16 %v608
    %v659 = vunpack.c.h.b16 %v608
    %v660 = vunpack.c.l.b16 %v609
    %v661 = vunpack.c.h.b16 %v609
    %v662 = vunpack.c.l.b16 %v610
    %v663 = vunpack.c.h.b16 %v610
    %v664 = vunpack.c.l.b16 %v611
    %v665 = vunpack.c.h.b16 %v611
    %v666 = vpack.c.b16 %v636, %v634
    %v667 = vpack.c.b16 %v637, %v635
    %v668 = vpack.c.b16 %v640, %v638
    %v669 = vpack.c.b16 %v641, %v639
    %v670 = vpack.c.b16 %v644, %v642
    %v671 = vpack.c.b16 %v645, %v643
    %v672 = vpack.c.b16 %v648, %v646
    %v673 = vpack.c.b16 %v649, %v647
    %v674 = vpack.c.b16 %v652, %v650
    %v675 = vpack.c.b16 %v653, %v651
    %v676 = vpack.c.b16 %v656, %v654
    %v677 = vpack.c.b16 %v657, %v655
    %v678 = vpack.c.b16 %v660, %v658
    %v679 = vpack.c.b16 %v661, %v659
    %v680 = vpack.c.b16 %v664, %v662
    %v681 = vpack.c.b16 %v665, %v663
    %698 = vmatpush.bf16.msra.mxu0 %v680
    %699 = vmatpush.bf16.msra.mxu0 %v678
    %700 = vmatpush.bf16.msra.mxu0 %v676
    %701 = vmatpush.bf16.msra.mxu0 %v674
    %702 = vmatpush.bf16.msra.mxu0 %v672
    %703 = vmatpush.bf16.msra.mxu0 %v670
    %704 = vmatpush.bf16.msra.mxu0 %v668
    %705 = vmatpush.bf16.msra.mxu0 %v666
    %706 = vmatmul.bf16.gmra.mxu0 %v595
    %v707 = vpop.f32.mrf.mxu0
    %v708 = vadd.f32 %v614, %v707
    %v709 = vpop.f32.mrf.mxu0
    %710 = vdwg.mxu0
    %711 = vmatpush.bf16.msra.mxu0 %v681
    %712 = vmatpush.bf16.msra.mxu0 %v679
    %713 = vmatpush.bf16.msra.mxu0 %v677
    %714 = vmatpush.bf16.msra.mxu0 %v675
    %715 = vmatpush.bf16.msra.mxu0 %v673
    %716 = vmatpush.bf16.msra.mxu0 %v671
    %717 = vmatpush.bf16.msra.mxu0 %v669
    %718 = vmatpush.bf16.msra.mxu0 %v667
    %719 = vmatmul.bf16.gmra.mxu0 %v595
    %v720 = vpop.f32.mrf.mxu0
    %v721 = vadd.f32 %v615, %v720
    %v722 = vpop.f32.mrf.mxu0
    %723 = vdwg.mxu0
    %v724 = vmul.f32 %v708, 0.2
    %v725 = vmul.f32 %v721, 0.2
    %v726 = vmax.f32 %v708, %v724
    %v727 = vmax.f32 %v721, %v725
    %v728 = vpack.c.bf16 %v726, %v726
    %v729 = vpack.c.bf16 %v727, %v727
    %v730 = vld [vmem:[#allocation8] sm:$0xff]
    %v731 = vld [vmem:[#allocation8 + $0x8] sm:$0xff]
    %v732 = vld [vmem:[#allocation8 + $0x10] sm:$0xff]
    %v733 = vld [vmem:[#allocation8 + $0x18] sm:$0xff]
    %v734 = vld [vmem:[#allocation8 + $0x20] sm:$0xff]
    %v735 = vld [vmem:[#allocation8 + $0x28] sm:$0xff]
    %v736 = vld [vmem:[#allocation8 + $0x30] sm:$0xff]
    %v737 = vld [vmem:[#allocation8 + $0x38] sm:$0xff]
    %v738 = vld [vmem:[#allocation8 + $0x40] sm:$0xff]
    %v739 = vld [vmem:[#allocation8 + $0x48] sm:$0xff]
    %v740 = vld [vmem:[#allocation8 + $0x50] sm:$0xff]
    %v741 = vld [vmem:[#allocation8 + $0x58] sm:$0xff]
    %v742 = vld [vmem:[#allocation8 + $0x60] sm:$0xff]
    %v743 = vld [vmem:[#allocation8 + $0x68] sm:$0xff]
    %v744 = vld [vmem:[#allocation8 + $0x70] sm:$0xff]
    %v745 = vld [vmem:[#allocation8 + $0x78] sm:$0xff]
    %v746 = vld [vmem:[#allocation8 + $0x80] sm:$0xff]
    %v747 = vld [vmem:[#allocation8 + $0x88] sm:$0xff]
    %v748 = vld [vmem:[#allocation8 + $0x90] sm:$0xff]
    %v749 = vld [vmem:[#allocation8 + $0x98] sm:$0xff]
    %v750 = vld [vmem:[#allocation8 + $0xa0] sm:$0xff]
    %v751 = vld [vmem:[#allocation8 + $0xa8] sm:$0xff]
    %v752 = vld [vmem:[#allocation8 + $0xb0] sm:$0xff]
    %v753 = vld [vmem:[#allocation8 + $0xb8] sm:$0xff]
    %v754 = vld [vmem:[#allocation8 + $0xc0] sm:$0xff]
    %v755 = vld [vmem:[#allocation8 + $0xc8] sm:$0xff]
    %v756 = vld [vmem:[#allocation8 + $0xd0] sm:$0xff]
    %v757 = vld [vmem:[#allocation8 + $0xd8] sm:$0xff]
    %v758 = vld [vmem:[#allocation8 + $0xe0] sm:$0xff]
    %v759 = vld [vmem:[#allocation8 + $0xe8] sm:$0xff]
    %v760 = vld [vmem:[#allocation8 + $0xf0] sm:$0xff]
    %v761 = vld [vmem:[#allocation8 + $0xf8] sm:$0xff]
    %v762 = vld [vmem:[#allocation11 + $0x3] sm:$0x3]
    %v764 = vperm.slane %v762, 0
    %v765 = vperm.slane %v762, 1
    %v800 = vunpack.c.l.b16 %v730
    %v801 = vunpack.c.h.b16 %v730
    %v802 = vunpack.c.l.b16 %v731
    %v803 = vunpack.c.h.b16 %v731
    %v804 = vunpack.c.l.b16 %v732
    %v805 = vunpack.c.h.b16 %v732
    %v806 = vunpack.c.l.b16 %v733
    %v807 = vunpack.c.h.b16 %v733
    %v808 = vunpack.c.l.b16 %v734
    %v809 = vunpack.c.h.b16 %v734
    %v810 = vunpack.c.l.b16 %v735
    %v811 = vunpack.c.h.b16 %v735
    %v812 = vunpack.c.l.b16 %v736
    %v813 = vunpack.c.h.b16 %v736
    %v814 = vunpack.c.l.b16 %v737
    %v815 = vunpack.c.h.b16 %v737
    %v816 = vunpack.c.l.b16 %v738
    %v817 = vunpack.c.h.b16 %v738
    %v818 = vunpack.c.l.b16 %v739
    %v819 = vunpack.c.h.b16 %v739
    %v820 = vunpack.c.l.b16 %v740
    %v821 = vunpack.c.h.b16 %v740
    %v822 = vunpack.c.l.b16 %v741
    %v823 = vunpack.c.h.b16 %v741
    %v824 = vunpack.c.l.b16 %v742
    %v825 = vunpack.c.h.b16 %v742
    %v826 = vunpack.c.l.b16 %v743
    %v827 = vunpack.c.h.b16 %v743
    %v828 = vunpack.c.l.b16 %v744
    %v829 = vunpack.c.h.b16 %v744
    %v830 = vunpack.c.l.b16 %v745
    %v831 = vunpack.c.h.b16 %v745
    %v832 = vunpack.c.l.b16 %v746
    %v833 = vunpack.c.h.b16 %v746
    %v834 = vunpack.c.l.b16 %v747
    %v835 = vunpack.c.h.b16 %v747
    %v836 = vunpack.c.l.b16 %v748
    %v837 = vunpack.c.h.b16 %v748
    %v838 = vunpack.c.l.b16 %v749
    %v839 = vunpack.c.h.b16 %v749
    %v840 = vunpack.c.l.b16 %v750
    %v841 = vunpack.c.h.b16 %v750
    %v842 = vunpack.c.l.b16 %v751
    %v843 = vunpack.c.h.b16 %v751
    %v844 = vunpack.c.l.b16 %v752
    %v845 = vunpack.c.h.b16 %v752
    %v846 = vunpack.c.l.b16 %v753
    %v847 = vunpack.c.h.b16 %v753
    %v848 = vunpack.c.l.b16 %v754
    %v849 = vunpack.c.h.b16 %v754
    %v850 = vunpack.c.l.b16 %v755
    %v851 = vunpack.c.h.b16 %v755
    %v852 = vunpack.c.l.b16 %v756
    %v853 = vunpack.c.h.b16 %v756
    %v854 = vunpack.c.l.b16 %v757
    %v855 = vunpack.c.h.b16 %v757
    %v856 = vunpack.c.l.b16 %v758
    %v857 = vunpack.c.h.b16 %v758
    %v858 = vunpack.c.l.b16 %v759
    %v859 = vunpack.c.h.b16 %v759
    %v860 = vunpack.c.l.b16 %v760
    %v861 = vunpack.c.h.b16 %v760
    %v862 = vunpack.c.l.b16 %v761
    %v863 = vunpack.c.h.b16 %v761
    %v864 = vpack.c.b16 %v802, %v800
    %v865 = vpack.c.b16 %v803, %v801
    %v866 = vpack.c.b16 %v806, %v804
    %v867 = vpack.c.b16 %v807, %v805
    %v868 = vpack.c.b16 %v810, %v808
    %v869 = vpack.c.b16 %v811, %v809
    %v870 = vpack.c.b16 %v814, %v812
    %v871 = vpack.c.b16 %v815, %v813
    %v872 = vpack.c.b16 %v818, %v816
    %v873 = vpack.c.b16 %v819, %v817
    %v874 = vpack.c.b16 %v822, %v820
    %v875 = vpack.c.b16 %v823, %v821
    %v876 = vpack.c.b16 %v826, %v824
    %v877 = vpack.c.b16 %v827, %v825
    %v878 = vpack.c.b16 %v830, %v828
    %v879 = vpack.c.b16 %v831, %v829
    %v880 = vpack.c.b16 %v834, %v832
    %v881 = vpack.c.b16 %v835, %v833
    %v882 = vpack.c.b16 %v838, %v836
    %v883 = vpack.c.b16 %v839, %v837
    %v884 = vpack.c.b16 %v842, %v840
    %v885 = vpack.c.b16 %v843, %v841
    %v886 = vpack.c.b16 %v846, %v844
    %v887 = vpack.c.b16 %v847, %v845
    %v888 = vpack.c.b16 %v850, %v848
    %v889 = vpack.c.b16 %v851, %v849
    %v890 = vpack.c.b16 %v854, %v852
    %v891 = vpack.c.b16 %v855, %v853
    %v892 = vpack.c.b16 %v858, %v856
    %v893 = vpack.c.b16 %v859, %v857
    %v894 = vpack.c.b16 %v862, %v860
    %v895 = vpack.c.b16 %v863, %v861
    %928 = vmatpush.bf16.msra.mxu0 %v878
    %929 = vmatpush.bf16.msra.mxu0 %v876
    %930 = vmatpush.bf16.msra.mxu0 %v874
    %931 = vmatpush.bf16.msra.mxu0 %v872
    %932 = vmatpush.bf16.msra.mxu0 %v870
    %933 = vmatpush.bf16.msra.mxu0 %v868
    %934 = vmatpush.bf16.msra.mxu0 %v866
    %935 = vmatpush.bf16.msra.mxu0 %v864
    %936 = vmatmul.bf16.gmra.mxu0 %v728
    %v937 = vpop.f32.mrf.mxu0
    %v938 = vadd.f32 %v764, %v937
    %v939 = vpop.f32.mrf.mxu0
    %940 = vdwg.mxu0
    %941 = vmatpush.bf16.msra.mxu0 %v894
    %942 = vmatpush.bf16.msra.mxu0 %v892
    %943 = vmatpush.bf16.msra.mxu0 %v890
    %944 = vmatpush.bf16.msra.mxu0 %v888
    %945 = vmatpush.bf16.msra.mxu0 %v886
    %946 = vmatpush.bf16.msra.mxu0 %v884
    %947 = vmatpush.bf16.msra.mxu0 %v882
    %948 = vmatpush.bf16.msra.mxu0 %v880
    %949 = vmatmul.bf16.gmra.mxu0 %v729
    %v950 = vpop.f32.mrf.mxu0
    %v951 = vadd.f32 %v938, %v950
    %v952 = vpop.f32.mrf.mxu0
    %953 = vdwg.mxu0
    %954 = vmatpush.bf16.msra.mxu0 %v879
    %955 = vmatpush.bf16.msra.mxu0 %v877
    %956 = vmatpush.bf16.msra.mxu0 %v875
    %957 = vmatpush.bf16.msra.mxu0 %v873
    %958 = vmatpush.bf16.msra.mxu0 %v871
    %959 = vmatpush.bf16.msra.mxu0 %v869
    %960 = vmatpush.bf16.msra.mxu0 %v867
    %961 = vmatpush.bf16.msra.mxu0 %v865
    %962 = vmatmul.bf16.gmra.mxu0 %v728
    %v963 = vpop.f32.mrf.mxu0
    %v964 = vadd.f32 %v765, %v963
    %v965 = vpop.f32.mrf.mxu0
    %966 = vdwg.mxu0
    %967 = vmatpush.bf16.msra.mxu0 %v895
    %968 = vmatpush.bf16.msra.mxu0 %v893
    %969 = vmatpush.bf16.msra.mxu0 %v891
    %970 = vmatpush.bf16.msra.mxu0 %v889
    %971 = vmatpush.bf16.msra.mxu0 %v887
    %972 = vmatpush.bf16.msra.mxu0 %v885
    %973 = vmatpush.bf16.msra.mxu0 %v883
    %974 = vmatpush.bf16.msra.mxu0 %v881
    %975 = vmatmul.bf16.gmra.mxu0 %v729
    %v976 = vpop.f32.mrf.mxu0
    %v977 = vadd.f32 %v964, %v976
    %v978 = vpop.f32.mrf.mxu0
    %979 = vdwg.mxu0
    %v980 = vmul.f32 %v951, 0.2
    %v981 = vmul.f32 %v977, 0.2
    %v982 = vmax.f32 %v951, %v980
    %v983 = vmax.f32 %v977, %v981
    %v984 = vpack.c.bf16 %v982, %v982
    %v985 = vpack.c.bf16 %v983, %v983
    %v986 = vld [vmem:[#allocation10] sm:$0xf]
    %v987 = vld [vmem:[#allocation10 + $0x4] sm:$0xf]
    %v988 = vld [vmem:[#allocation10 + $0x8] sm:$0xf]
    %v989 = vld [vmem:[#allocation10 + $0xc] sm:$0xf]
    %v990 = vld [vmem:[#allocation10 + $0x10] sm:$0xf]
    %v991 = vld [vmem:[#allocation10 + $0x14] sm:$0xf]
    %v992 = vld [vmem:[#allocation10 + $0x18] sm:$0xf]
    %v993 = vld [vmem:[#allocation10 + $0x1c] sm:$0xf]
    %v994 = vld [vmem:[#allocation10 + $0x20] sm:$0xf]
    %v995 = vld [vmem:[#allocation10 + $0x24] sm:$0xf]
    %v996 = vld [vmem:[#allocation10 + $0x28] sm:$0xf]
    %v997 = vld [vmem:[#allocation10 + $0x2c] sm:$0xf]
    %v998 = vld [vmem:[#allocation10 + $0x30] sm:$0xf]
    %v999 = vld [vmem:[#allocation10 + $0x34] sm:$0xf]
    %v1000 = vld [vmem:[#allocation10 + $0x38] sm:$0xf]
    %v1001 = vld [vmem:[#allocation10 + $0x3c] sm:$0xf]
    %v1002 = vld [vmem:[#allocation10 + $0x40] sm:$0xf]
    %v1003 = vld [vmem:[#allocation10 + $0x44] sm:$0xf]
    %v1004 = vld [vmem:[#allocation10 + $0x48] sm:$0xf]
    %v1005 = vld [vmem:[#allocation10 + $0x4c] sm:$0xf]
    %v1006 = vld [vmem:[#allocation10 + $0x50] sm:$0xf]
    %v1007 = vld [vmem:[#allocation10 + $0x54] sm:$0xf]
    %v1008 = vld [vmem:[#allocation10 + $0x58] sm:$0xf]
    %v1009 = vld [vmem:[#allocation10 + $0x5c] sm:$0xf]
    %v1010 = vld [vmem:[#allocation10 + $0x60] sm:$0xf]
    %v1011 = vld [vmem:[#allocation10 + $0x64] sm:$0xf]
    %v1012 = vld [vmem:[#allocation10 + $0x68] sm:$0xf]
    %v1013 = vld [vmem:[#allocation10 + $0x6c] sm:$0xf]
    %v1014 = vld [vmem:[#allocation10 + $0x70] sm:$0xf]
    %v1015 = vld [vmem:[#allocation10 + $0x74] sm:$0xf]
    %v1016 = vld [vmem:[#allocation10 + $0x78] sm:$0xf]
    %v1017 = vld [vmem:[#allocation10 + $0x7c] sm:$0xf]
    %v1018 = vld [vmem:[#allocation11 + $0x5] sm:$0x1]
    %v1020 = vperm.slane %v1018, 0
    %v1054 = vunpack.c.l.b16 %v986
    %v1055 = vunpack.c.l.b16 %v987
    %v1056 = vunpack.c.l.b16 %v988
    %v1057 = vunpack.c.l.b16 %v989
    %v1058 = vunpack.c.l.b16 %v990
    %v1059 = vunpack.c.l.b16 %v991
    %v1060 = vunpack.c.l.b16 %v992
    %v1061 = vunpack.c.l.b16 %v993
    %v1062 = vunpack.c.l.b16 %v994
    %v1063 = vunpack.c.l.b16 %v995
    %v1064 = vunpack.c.l.b16 %v996
    %v1065 = vunpack.c.l.b16 %v997
    %v1066 = vunpack.c.l.b16 %v998
    %v1067 = vunpack.c.l.b16 %v999
    %v1068 = vunpack.c.l.b16 %v1000
    %v1069 = vunpack.c.l.b16 %v1001
    %v1070 = vunpack.c.l.b16 %v1002
    %v1071 = vunpack.c.l.b16 %v1003
    %v1072 = vunpack.c.l.b16 %v1004
    %v1073 = vunpack.c.l.b16 %v1005
    %v1074 = vunpack.c.l.b16 %v1006
    %v1075 = vunpack.c.l.b16 %v1007
    %v1076 = vunpack.c.l.b16 %v1008
    %v1077 = vunpack.c.l.b16 %v1009
    %v1078 = vunpack.c.l.b16 %v1010
    %v1079 = vunpack.c.l.b16 %v1011
    %v1080 = vunpack.c.l.b16 %v1012
    %v1081 = vunpack.c.l.b16 %v1013
    %v1082 = vunpack.c.l.b16 %v1014
    %v1083 = vunpack.c.l.b16 %v1015
    %v1084 = vunpack.c.l.b16 %v1016
    %v1085 = vunpack.c.l.b16 %v1017
    %v1086 = vpack.c.b16 %v1055, %v1054
    %v1087 = vpack.c.b16 %v1057, %v1056
    %v1088 = vpack.c.b16 %v1059, %v1058
    %v1089 = vpack.c.b16 %v1061, %v1060
    %v1090 = vpack.c.b16 %v1063, %v1062
    %v1091 = vpack.c.b16 %v1065, %v1064
    %v1092 = vpack.c.b16 %v1067, %v1066
    %v1093 = vpack.c.b16 %v1069, %v1068
    %v1094 = vpack.c.b16 %v1071, %v1070
    %v1095 = vpack.c.b16 %v1073, %v1072
    %v1096 = vpack.c.b16 %v1075, %v1074
    %v1097 = vpack.c.b16 %v1077, %v1076
    %v1098 = vpack.c.b16 %v1079, %v1078
    %v1099 = vpack.c.b16 %v1081, %v1080
    %v1100 = vpack.c.b16 %v1083, %v1082
    %v1101 = vpack.c.b16 %v1085, %v1084
    %1118 = vmatpush.bf16.msra.mxu0 %v1093
    %1119 = vmatpush.bf16.msra.mxu0 %v1092
    %1120 = vmatpush.bf16.msra.mxu0 %v1091
    %1121 = vmatpush.bf16.msra.mxu0 %v1090
    %1122 = vmatpush.bf16.msra.mxu0 %v1089
    %1123 = vmatpush.bf16.msra.mxu0 %v1088
    %1124 = vmatpush.bf16.msra.mxu0 %v1087
    %1125 = vmatpush.bf16.msra.mxu0 %v1086
    %1126 = vmatmul.bf16.gmra.mxu0 %v984
    %v1127 = vpop.f32.mrf.mxu0
    %v1128 = vadd.f32 %v1020, %v1127
    %v1129 = vpop.f32.mrf.mxu0
    %1130 = vdwg.mxu0
    %1131 = vmatpush.bf16.msra.mxu0 %v1101
    %1132 = vmatpush.bf16.msra.mxu0 %v1100
    %1133 = vmatpush.bf16.msra.mxu0 %v1099
    %1134 = vmatpush.bf16.msra.mxu0 %v1098
    %1135 = vmatpush.bf16.msra.mxu0 %v1097
    %1136 = vmatpush.bf16.msra.mxu0 %v1096
    %1137 = vmatpush.bf16.msra.mxu0 %v1095
    %1138 = vmatpush.bf16.msra.mxu0 %v1094
    %1139 = vmatmul.bf16.gmra.mxu0 %v985
    %v1140 = vpop.f32.mrf.mxu0
    %v1141 = vadd.f32 %v1128, %v1140
    %v1142 = vpop.f32.mrf.mxu0
    %1143 = vdwg.mxu0
    %1144 = vst [vmem:[#allocation13] sm:$0x3] %v1141
    // Predicated region
    $region50: #{tpu_custom_call.1} parent=1 // pred_check
      _
    $region51: #{tpu_custom_call.1} parent=1 // pred_check_branch
      %1146 = sbr.rel (0) target = $region53
    $region52: #{tpu_custom_call.1} parent=1 // pred_region
      %1148 = vsyncadd [#allocation4], 0
      %s1150 = sshll.u32 [#allocation13], 4
      %s1151 = int_to_ptr.vmem [resolvable:$true] %s1150
      %s1152 = sshll.u32 %s6, 4
      %s1153 = int_to_ptr.hbm [resolvable:$true] %s1152
      %1155 = dma.vmem_to_hbm [thread:$0]  %s1151, 32, %s1153, [#allocation4]
    $region53: #{tpu_custom_call.1} parent=1 // pred_fallthru
      _
    // Predicated region
    $region54: #{tpu_custom_call.1} parent=1 // pred_check
      _
    $region55: #{tpu_custom_call.1} parent=1 // pred_check_branch
      %1157 = sbr.rel (0) target = $region57
    $region56: #{tpu_custom_call.1} parent=1 // pred_region
      %1159 = dma.done [#allocation4], 32
    $region57: #{tpu_custom_call.1} parent=1 // pred_fallthru
      _
    %1160 = vsyncpa [#allocation3], 1
    %1161 = vsyncpa [#allocation6], 1
    %1162 = vsyncpa [#allocation9], 1
    %1163 = vsyncpa [#allocation12], 1
    %1164 = vsyncpa [#allocation4], 1

</llo_original>
